<compile_context>
chip_gen: v5e
topology: v5e:2x2
jax: 0.10.0
libtpu: 0.0.40
codegen_flags: <defaults>
</compile_context>

<pallas_src>
import functools

import jax
import jax.numpy as jnp
from jax import lax
from jax.experimental import pallas as pl
from jax.experimental.pallas import tpu as pltpu

NEG_SLOPE = 0.01  # nn.LeakyReLU() default


def _leaky_relu(x):
    return jnp.where(x > 0, x, NEG_SLOPE * x)


def _self_attention_adj_kernel(x_ref, qw_ref, kw_ref, out_ref, *,
                               num_nodes, batch_block):
    # x_ref block : (1, F, Bb*N)  feature-major, node axes of Bb batches concat
    # qw/kw       : (F, A)
    # out block   : (Bb, N, N)
    x2 = x_ref[0]                      # (F, Bb*N)
    qw = qw_ref[...]                   # (F, A)
    kw = kw_ref[...]                   # (F, A)

    # Contract over the leading dim of both operands -> no transposes needed.
    contract0 = (((0,), (0,)), ((), ()))

    # One lane-dense projection matmul per weight for all folded batches:
    # (F, A) x (F, Bb*N) -> (A, Bb*N).
    qT = lax.dot_general(qw, x2, contract0, preferred_element_type=jnp.float32)
    kT = lax.dot_general(kw, x2, contract0, preferred_element_type=jnp.float32)
    qT = _leaky_relu(qT)
    kT = _leaky_relu(kT)

    # Per-batch scores + softmax; batch_block is a small static constant, so a
    # plain unrolled loop is fine.
    for b in range(batch_block):
        lo = b * num_nodes
        qb = qT[:, lo:lo + num_nodes]  # (A, N)
        kb = kT[:, lo:lo + num_nodes]  # (A, N)
        # s[n, m] = sum_a q[n, a] * k[m, a] == (Q @ K^T)[n, m]
        s = lax.dot_general(qb, kb, contract0,
                            preferred_element_type=jnp.float32)   # (N, N)
        # softmax over dim=1 of (B, N, N) == axis 0 (sublanes) of each (N, N).
        # Exact normalization (not approx reciprocal) so every column sums to
        # exactly 1 in both compiled and interpret execution.
        m = jnp.max(s, axis=0, keepdims=True)
        e = jnp.exp(s - m)
        denom = jnp.sum(e, axis=0, keepdims=True)
        out_ref[b] = (e / denom).astype(out_ref.dtype)


def self_attention_adj(x, queue_w, key_w, *, batch_block=None):
    """x: (B, F, N) f32; queue_w/key_w: (F, A) f32 -> (B, N, N) f32."""
    B, F, N = x.shape
    Fq, A = queue_w.shape
    assert Fq == F and key_w.shape == (F, A)

    if batch_block is None:
        # Fold batches so the projection matmul lane width (Bb*N) approaches
        # 256 for small-N problems ...
        batch_block = max(1, min(B, 256 // max(N, 1)))
        # ... but keep at least 2 grid steps when B allows it so both v7x
        # TensorCores get a parallel iteration (no effect on v5e/v6e).
        while batch_block > 1 and B // batch_block < 2:
            batch_block -= 1
    Bb = batch_block
    num_bt = pl.cdiv(B, Bb)
    Bp = num_bt * Bb

    # Wrapper-side layout plumbing (plain XLA, outside the kernel): pad the
    # batch to a multiple of Bb and present x feature-major with the node axes
    # of the Bb folded batches concatenated: (num_bt, F, Bb*N).
    if Bp != B:
        x = jnp.pad(x, ((0, Bp - B), (0, 0), (0, 0)))
    x3 = (x.reshape(num_bt, Bb, F, N)
            .transpose(0, 2, 1, 3)
            .reshape(num_bt, F, Bb * N))

    kernel = functools.partial(_self_attention_adj_kernel,
                               num_nodes=N, batch_block=Bb)
    out = pl.pallas_call(
        kernel,
        out_shape=jax.ShapeDtypeStruct((Bp, N, N), jnp.float32),
        grid_spec=pltpu.PrefetchScalarGridSpec(
            num_scalar_prefetch=0,
            grid=(num_bt,),
            in_specs=[
                pl.BlockSpec((1, F, Bb * N), lambda bt: (bt, 0, 0)),
                pl.BlockSpec((F, A), lambda bt: (0, 0)),
                pl.BlockSpec((F, A), lambda bt: (0, 0)),
            ],
            out_specs=pl.BlockSpec((Bb, N, N), lambda bt: (bt, 0, 0)),
        ),
        compiler_params=pltpu.CompilerParams(
            dimension_semantics=("parallel",),
            # Explicit scoped-VMEM budget (tiny working set here; value is
            # safe on v7x's 64 MiB physical VMEM as well as v5e/v6e).
            vmem_limit_bytes=32 * 1024 * 1024,
        ),
    )(x3, queue_w, key_w)
    # TODO(synk): for large N, add a second "parallel" grid axis tiling the
    # columns of the N x N attention matrix; the softmax reduction (rows) stays
    # whole within each column tile, so no online softmax is needed.
    return out[:B]


def kaiming_uniform_init(key, shape):
    # nn.init.kaiming_uniform_ defaults: a=0, mode='fan_in',
    # nonlinearity='leaky_relu' -> gain=sqrt(2); fan_in = shape[1].
    fan_in = shape[1]
    gain = jnp.sqrt(2.0)
    bound = gain * jnp.sqrt(3.0 / fan_in)
    return jax.random.uniform(key, shape, jnp.float32, -bound, bound)


if __name__ == "__main__":
    # Small shapes consistent with the module's forward:
    # batch=2, feature_size=4, num_nodes=16, attention_size=8.
    B, F, N, A = 2, 4, 16, 8

    root = jax.random.PRNGKey(0)
    kx, kq, kk = jax.random.split(root, 3)

    x = jax.random.normal(kx, (B, F, N), dtype=jnp.float32)
    queue_w = kaiming_uniform_init(kq, (F, A))
    key_w = kaiming_uniform_init(kk, (F, A))

    out = self_attention_adj(x, queue_w, key_w)
    jax.block_until_ready(out)

    assert out.shape == (B, N, N)
    # Sanity: softmax over dim=1 => columns of each NxN matrix sum to 1.
    # Normalization is exact in-kernel, so this is tight.
    col_sums = jnp.sum(out, axis=1)
    assert jnp.allclose(col_sums, jnp.ones_like(col_sums), atol=1e-3)

    # Cross-check against a pure-JAX reference. Tolerance allows for the
    # TPU MXU's default (reduced-precision) f32 matmul path on hardware; in
    # interpret mode the match is near bit-exact.
    xt = jnp.transpose(x, (0, 2, 1))
    q_ref = jax.nn.leaky_relu(jnp.einsum("bnf,fa->bna", xt, queue_w), NEG_SLOPE)
    k_ref = jax.nn.leaky_relu(jnp.einsum("bnf,fa->bna", xt, key_w), NEG_SLOPE)
    s_ref = jnp.einsum("bna,bma->bnm", q_ref, k_ref)
    ref = jax.nn.softmax(s_ref, axis=1)
    assert jnp.allclose(out, ref, atol=1e-2, rtol=1e-2), "mismatch vs JAX reference"

    print("KERNEL_OK")
</pallas_src>

<mosaic_0001>
module attributes {stable_mosaic.version = 11 : i64} {
  func.func @_self_attention_adj_kernel(%arg0: i32, %arg1: memref<1x4x16xf32, #tpu.memory_space<vmem>>, %arg2: memref<4x8xf32, #tpu.memory_space<vmem>>, %arg3: memref<4x8xf32, #tpu.memory_space<vmem>>, %arg4: memref<1x16x16xf32, #tpu.memory_space<vmem>>) attributes {dimension_semantics = [#tpu.dimension_semantics<parallel>], iteration_bounds = array<i64: 2>, scalar_prefetch = 0 : i64, scratch_operands = 0 : i64, tpu.core_type = #tpu.core_type<tc>, window_params = [{transform_indices = @transform_0, window_bounds = array<i64: 1, 4, 16>}, {pipeline_mode = #tpu.pipeline_mode<synchronous>, transform_indices = @transform_1, window_bounds = array<i64: 4, 8>}, {pipeline_mode = #tpu.pipeline_mode<synchronous>, transform_indices = @transform_2, window_bounds = array<i64: 4, 8>}, {transform_indices = @transform_3, window_bounds = array<i64: 1, 16, 16>}]} {
    %c0 = arith.constant 0 : index
    %c0_0 = arith.constant 0 : index
    %c0_1 = arith.constant 0 : index
    %0 = vector.load %arg1[%c0, %c0_0, %c0_1] : memref<1x4x16xf32, #tpu.memory_space<vmem>>, vector<1x4x16xf32>
    %1 = vector.shape_cast %0 : vector<1x4x16xf32> to vector<4x16xf32>
    %c0_2 = arith.constant 0 : index
    %c0_3 = arith.constant 0 : index
    %2 = vector.load %arg2[%c0_2, %c0_3] : memref<4x8xf32, #tpu.memory_space<vmem>>, vector<4x8xf32>
    %c0_4 = arith.constant 0 : index
    %c0_5 = arith.constant 0 : index
    %3 = vector.load %arg3[%c0_4, %c0_5] : memref<4x8xf32, #tpu.memory_space<vmem>>, vector<4x8xf32>
    %cst = arith.constant dense<0.000000e+00> : vector<8x16xf32>
    %4 = tpu.matmul %2, %1, %cst {dimension_numbers = #tpu.dot_dimension_numbers<[0], [0], [1], [1], [0, 1, 1, 1], [], []>} : vector<4x8xf32>, vector<4x16xf32>, vector<8x16xf32> -> vector<8x16xf32>
    %cst_6 = arith.constant dense<0.000000e+00> : vector<8x16xf32>
    %5 = tpu.matmul %3, %1, %cst_6 {dimension_numbers = #tpu.dot_dimension_numbers<[0], [0], [1], [1], [0, 1, 1, 1], [], []>} : vector<4x8xf32>, vector<4x16xf32>, vector<8x16xf32> -> vector<8x16xf32>
    %cst_7 = arith.constant 0.000000e+00 : f32
    %6 = vector.broadcast %cst_7 : f32 to vector<8x16xf32>
    %7 = arith.cmpf ogt, %4, %6 : vector<8x16xf32>
    %cst_8 = arith.constant 0.00999999977 : f32
    %8 = vector.broadcast %cst_8 : f32 to vector<8x16xf32>
    %9 = arith.mulf %8, %4 : vector<8x16xf32>
    %10 = arith.select %7, %4, %9 : vector<8x16xi1>, vector<8x16xf32>
    %cst_9 = arith.constant 0.000000e+00 : f32
    %11 = vector.broadcast %cst_9 : f32 to vector<8x16xf32>
    %12 = arith.cmpf ogt, %5, %11 : vector<8x16xf32>
    %cst_10 = arith.constant 0.00999999977 : f32
    %13 = vector.broadcast %cst_10 : f32 to vector<8x16xf32>
    %14 = arith.mulf %13, %5 : vector<8x16xf32>
    %15 = arith.select %12, %5, %14 : vector<8x16xi1>, vector<8x16xf32>
    %cst_11 = arith.constant dense<0.000000e+00> : vector<16x16xf32>
    %16 = tpu.matmul %10, %15, %cst_11 {dimension_numbers = #tpu.dot_dimension_numbers<[0], [0], [1], [1], [0, 1, 1, 1], [], []>} : vector<8x16xf32>, vector<8x16xf32>, vector<16x16xf32> -> vector<16x16xf32>
    %cst_12 = arith.constant dense<0xFF800000> : vector<16xf32>
    %17 = vector.multi_reduction <maximumf>, %16, %cst_12 [0] : vector<16x16xf32> to vector<16xf32>
    %18 = vector.shape_cast %17 : vector<16xf32> to vector<1x16xf32>
    %19 = vector.broadcast %18 : vector<1x16xf32> to vector<16x16xf32>
    %20 = arith.subf %16, %19 : vector<16x16xf32>
    %21 = math.exp %20 : vector<16x16xf32>
    %cst_13 = arith.constant dense<0.000000e+00> : vector<16xf32>
    %22 = vector.multi_reduction <add>, %21, %cst_13 [0] : vector<16x16xf32> to vector<16xf32>
    %23 = vector.shape_cast %22 : vector<16xf32> to vector<1x16xf32>
    %24 = vector.broadcast %23 : vector<1x16xf32> to vector<16x16xf32>
    %25 = arith.divf %21, %24 : vector<16x16xf32>
    %c0_14 = arith.constant 0 : index
    %c0_15 = arith.constant 0 : index
    %c0_16 = arith.constant 0 : index
    %26 = vector.load %arg4[%c0_14, %c0_15, %c0_16] : memref<1x16x16xf32, #tpu.memory_space<vmem>>, vector<1x16x16xf32>
    %27 = vector.shape_cast %26 : vector<1x16x16xf32> to vector<16x16xf32>
    %28 = vector.shape_cast %25 : vector<16x16xf32> to vector<1x16x16xf32>
    tpu.vector_store %arg4[%c0_14, %c0_15, %c0_16], %28 {strides = array<i32>} : memref<1x16x16xf32, #tpu.memory_space<vmem>>, vector<1x16x16xf32>,
    return
  }
  func.func @transform_0(%arg0: i32) -> (i32, i32, i32) {
    %c0_i32 = arith.constant 0 : i32
    %c0_i32_0 = arith.constant 0 : i32
    %c0_i32_1 = arith.constant 0 : i32
    return %arg0, %c0_i32, %c0_i32_0 : i32, i32, i32
  }
  func.func @transform_1(%arg0: i32) -> (i32, i32) {
    %c0_i32 = arith.constant 0 : i32
    %c0_i32_0 = arith.constant 0 : i32
    %c0_i32_1 = arith.constant 0 : i32
    return %c0_i32, %c0_i32_0 : i32, i32
  }
  func.func @transform_2(%arg0: i32) -> (i32, i32) {
    %c0_i32 = arith.constant 0 : i32
    %c0_i32_0 = arith.constant 0 : i32
    %c0_i32_1 = arith.constant 0 : i32
    return %c0_i32, %c0_i32_0 : i32, i32
  }
  func.func @transform_3(%arg0: i32) -> (i32, i32, i32) {
    %c0_i32 = arith.constant 0 : i32
    %c0_i32_0 = arith.constant 0 : i32
    %c0_i32_1 = arith.constant 0 : i32
    return %arg0, %c0_i32, %c0_i32_0 : i32, i32, i32
  }
}

</mosaic_0001>

<llo_original>
// kernel: tpu_custom_call.1
$region0: #{tpu_custom_call.1}
  #allocation0 [shape = 'u32[]', space=smem, size = 0x4, offset = 0x4, fixed_abs, tag = 'smem constant byte address 0x4 - core index']
  #allocation1 [shape = 'u32[72,128]{1,0:T(1,128)}', space=vmem, size = 0x9000, scoped, tag = 'internal scratch']
  %s0 = inlined_call_operand.hbm [shape: f32[2,4,16], index: 0, kind: input, shape index: {}]
  %s1 = inlined_call_operand.hbm [shape: f32[4,8], index: 1, kind: input, shape index: {}]
  %s2 = inlined_call_operand.hbm [shape: f32[4,8], index: 2, kind: input, shape index: {}]
  %s3 = inlined_call_operand.hbm [shape: f32[2,16,16], index: 3, kind: output, shape index: {}]
  %s4 = sld [smem:[#allocation0]]
  $region57: #{tpu_custom_call.1} parent=0
    _
  %s6 = ssub.s32 1, %s4
  %s7 = scalar_select 0, %s6, %s4
  $region1: #{tpu_custom_call.1} parent=0
    #allocation2 [shape = 'u8[4096]{0}', space=vmem, size = 0x1000, scoped, tag = 'input window, operand 0']
    #allocation3 [shape = 's32[2]{0}', space=sflag, size = 0x8, scoped, tag = 'scoped memory for tpu_custom_call.1']
    #allocation4 [shape = 's32[2]{0}', space=sflag, size = 0x8, scoped, tag = 'scoped memory for tpu_custom_call.1']
    #allocation5 [shape = 'u8[2048]{0}', space=vmem, size = 0x800, scoped, tag = 'input window, operand 1, single buffered']
    #allocation6 [shape = 's32[1]{0}', space=sflag, size = 0x4, scoped, tag = 'scoped memory for tpu_custom_call.1']
    #allocation7 [shape = 'u8[2048]{0}', space=vmem, size = 0x800, scoped, tag = 'input window, operand 2, single buffered']
    #allocation8 [shape = 'u8[16384]{0}', space=vmem, size = 0x4000, scoped, tag = 'output window, operand 0']
    %8 = vsyncpa [#allocation3], 0
    %s9 = scalar_lea.sflag [#allocation3], 1
    %10 = vsyncpa %s9, 0
    %11 = vsyncpa [#allocation6], 0
    %12 = vsyncpa [#allocation4], 0
    %s13 = scalar_lea.sflag [#allocation4], 1
    %14 = vsyncpa %s13, 0
    loop: start=0, step=1, limit=4
    $region2: #{tpu_custom_call.1} parent=1 // loop_pre_header
      _
    $region3: #{tpu_custom_call.1} parent=1 // loop_header
      %s16 = sphi 0, %s20
      %p17 = scmp.ge.s32.totalorder %s16, 4
      %s26 = sphi 0, %s28
      %s29 = sphi 0, %s26
      %s30 = sphi 0, %s29
      %s46 = sphi 0, %s30
      %s50 = sphi 0, %s50
      %s52 = sphi 0, %s50
      %s53 = sphi 0, %s52
      %s67 = sphi 0, %s53
      %s71 = sphi 0, %s71
      %s73 = sphi 0, %s71
      %s74 = sphi 0, %s73
      %s88 = sphi 0, %s74
      %s94 = sphi 0, %s96
      %s97 = sphi 0, %s94
      %s98 = sphi 0, %s97
      %s114 = sphi 0, %s98
    $region4: #{tpu_custom_call.1} parent=1 // loop_header_branch
      %19 = sbr.rel (%p17) target = $region8
    $region5: #{tpu_custom_call.1} parent=1 // loop_body
      %s21 = ssub.s32 %s16, 1
      %s22 = ssub.s32 %s16, 2
      %s23 = sadd.s32 %s16, 1
      %s24 = ssub.s32 %s16, %s23
      %p25 = scmp.eq.s32.totalorder %s24, 0
      %s27 = sadd.s32 %s26, 1
      %s28 = scalar_select %p25, %s26, %s27
      %p31 = pneg %p25
      %p32 = scmp.eq.s32.totalorder %s16, 1
      %p33 = por %p31, %p32
      %p34 = scmp.ne.s32.totalorder %s26, %s29
      %p35 = scmp.eq.s32.totalorder %s16, 0
      %p36 = por %p34, %p35
      %p37 = scmp.ne.s32.totalorder %s26, %s29
      %p38 = scmp.eq.s32.totalorder %s21, 1
      %p39 = por %p37, %p38
      %p40 = scmp.ne.s32.totalorder %s29, %s30
      %p41 = scmp.eq.s32.totalorder %s21, 0
      %p42 = por %p40, %p41
      %p43 = scmp.ne.s32.totalorder %s29, %s30
      %p44 = scmp.eq.s32.totalorder %s22, 1
      %p45 = por %p43, %p44
      %p47 = scmp.ne.s32.totalorder %s30, %s46
      %p48 = scmp.eq.s32.totalorder %s22, 0
      %p49 = por %p47, %p48
      %s51 = sadd.s32 %s50, 1
      %p54 = scmp.eq.s32.totalorder %s16, 1
      %p55 = scmp.ne.s32.totalorder %s50, %s52
      %p56 = scmp.eq.s32.totalorder %s16, 0
      %p57 = por %p55, %p56
      %p58 = scmp.ne.s32.totalorder %s50, %s52
      %p59 = scmp.eq.s32.totalorder %s21, 1
      %p60 = por %p58, %p59
      %p61 = scmp.ne.s32.totalorder %s52, %s53
      %p62 = scmp.eq.s32.totalorder %s21, 0
      %p63 = por %p61, %p62
      %p64 = scmp.ne.s32.totalorder %s52, %s53
      %p65 = scmp.eq.s32.totalorder %s22, 1
      %p66 = por %p64, %p65
      %p68 = scmp.ne.s32.totalorder %s53, %s67
      %p69 = scmp.eq.s32.totalorder %s22, 0
      %p70 = por %p68, %p69
      %s72 = sadd.s32 %s71, 1
      %p75 = scmp.eq.s32.totalorder %s16, 1
      %p76 = scmp.ne.s32.totalorder %s71, %s73
      %p77 = scmp.eq.s32.totalorder %s16, 0
      %p78 = por %p76, %p77
      %p79 = scmp.ne.s32.totalorder %s71, %s73
      %p80 = scmp.eq.s32.totalorder %s21, 1
      %p81 = por %p79, %p80
      %p82 = scmp.ne.s32.totalorder %s73, %s74
      %p83 = scmp.eq.s32.totalorder %s21, 0
      %p84 = por %p82, %p83
      %p85 = scmp.ne.s32.totalorder %s73, %s74
      %p86 = scmp.eq.s32.totalorder %s22, 1
      %p87 = por %p85, %p86
      %p89 = scmp.ne.s32.totalorder %s74, %s88
      %p90 = scmp.eq.s32.totalorder %s22, 0
      %p91 = por %p89, %p90
      %s92 = ssub.s32 %s16, %s23
      %p93 = scmp.eq.s32.totalorder %s92, 0
      %s95 = sadd.s32 %s94, 1
      %s96 = scalar_select %p93, %s94, %s95
      %p99 = pneg %p93
      %p100 = scmp.eq.s32.totalorder %s16, 1
      %p101 = por %p99, %p100
      %p102 = scmp.ne.s32.totalorder %s94, %s97
      %p103 = scmp.eq.s32.totalorder %s16, 0
      %p104 = por %p102, %p103
      %p105 = scmp.ne.s32.totalorder %s94, %s97
      %p106 = scmp.eq.s32.totalorder %s21, 1
      %p107 = por %p105, %p106
      %p108 = scmp.ne.s32.totalorder %s97, %s98
      %p109 = scmp.eq.s32.totalorder %s21, 0
      %p110 = por %p108, %p109
      %p111 = scmp.ne.s32.totalorder %s97, %s98
      %p112 = scmp.eq.s32.totalorder %s22, 1
      %p113 = por %p111, %p112
      %p115 = scmp.ne.s32.totalorder %s98, %s114
      %p116 = scmp.eq.s32.totalorder %s22, 0
      %p117 = por %p115, %p116
      %p118 = scmp.le.s32.totalorder 1, %s16
      %p119 = scmp.lt.s32.totalorder %s16, 3
      %p120 = pnand %p118, %p119
      %p121 = pneg %p120
      // Predicated region
      $region9: #{tpu_custom_call.1} parent=5 // pred_check
        _
      $region10: #{tpu_custom_call.1} parent=5 // pred_check_branch
        %123 = sbr.rel (%p120) target = $region12
      $region11: #{tpu_custom_call.1} parent=5 // pred_region
        %s124 = ssub.s32 %s16, 1
        // Predicated region
        $region13: #{tpu_custom_call.1} parent=11 // pred_check
          %p125 = pneg %p63
        $region14: #{tpu_custom_call.1} parent=11 // pred_check_branch
          %127 = sbr.rel (%p125) target = $region16
        $region15: #{tpu_custom_call.1} parent=11 // pred_region
          %129 = vsyncadd [#allocation6], 0
          %s131 = sshll.u32 %s1, 4
          %s132 = int_to_ptr.hbm [resolvable:$true] %s131
          %s133 = sshll.u32 [#allocation5], 4
          %s134 = int_to_ptr.vmem [resolvable:$true] %s133
          %136 = dma.hbm_to_vmem [thread:$0]  %s132, 64, %s134, [#allocation6]
        $region16: #{tpu_custom_call.1} parent=11 // pred_fallthru
          _
        // Predicated region
        $region17: #{tpu_custom_call.1} parent=11 // pred_check
          %p137 = pneg %p84
        $region18: #{tpu_custom_call.1} parent=11 // pred_check_branch
          %139 = sbr.rel (%p137) target = $region20
        $region19: #{tpu_custom_call.1} parent=11 // pred_region
          %141 = vsyncadd [#allocation6], 0
          %s143 = sshll.u32 %s2, 4
          %s144 = int_to_ptr.hbm [resolvable:$true] %s143
          %s145 = sshll.u32 [#allocation7], 4
          %s146 = int_to_ptr.vmem [resolvable:$true] %s145
          %148 = dma.hbm_to_vmem [thread:$0]  %s144, 64, %s146, [#allocation6]
        $region20: #{tpu_custom_call.1} parent=11 // pred_fallthru
          _
      $region12: #{tpu_custom_call.1} parent=5 // pred_fallthru
        _
      %p149 = scmp.lt.s32.totalorder %s16, 2
      // Predicated region
      $region21: #{tpu_custom_call.1} parent=5 // pred_check
        %p150 = pneg %p149
      $region22: #{tpu_custom_call.1} parent=5 // pred_check_branch
        %152 = sbr.rel (%p150) target = $region24
      $region23: #{tpu_custom_call.1} parent=5 // pred_region
        // Predicated region
        $region25: #{tpu_custom_call.1} parent=23 // pred_check
          %p153 = pneg %p36
        $region26: #{tpu_custom_call.1} parent=23 // pred_check_branch
          %155 = sbr.rel (%p153) target = $region28
        $region27: #{tpu_custom_call.1} parent=23 // pred_region
          %s156 = sand.u32 %s26, 1
          %s157 = scalar_lea.sflag [#allocation3], %s156
          %s158 = sand.u32 %s26, 1
          %s159 = smul.addr %s158, 4
          %s160 = scalar_lea.vmem [#allocation2], %s159
          %162 = vsyncadd %s157, 0
          %s163 = smul.addr %s16, 4
          %s164 = scalar_lea.hbm %s0, %s163
          %s166 = sshll.u32 %s164, 4
          %s167 = int_to_ptr.hbm [resolvable:$true] %s166
          %s168 = sshll.u32 %s160, 4
          %s169 = int_to_ptr.vmem [resolvable:$true] %s168
          %171 = dma.hbm_to_vmem [thread:$0]  %s167, 64, %s169, %s157
        $region28: #{tpu_custom_call.1} parent=23 // pred_fallthru
          _
      $region24: #{tpu_custom_call.1} parent=5 // pred_fallthru
        _
      %p172 = scmp.le.s32.totalorder 1, %s16
      %p173 = scmp.lt.s32.totalorder %s16, 3
      %p174 = pnand %p172, %p173
      %p175 = pneg %p174
      // Predicated region
      $region29: #{tpu_custom_call.1} parent=5 // pred_check
        _
      $region30: #{tpu_custom_call.1} parent=5 // pred_check_branch
        %177 = sbr.rel (%p174) target = $region32
      $region31: #{tpu_custom_call.1} parent=5 // pred_region
        %s178 = ssub.s32 %s16, 1
        %s179 = sand.u32 %s29, 1
        %s180 = scalar_lea.sflag [#allocation3], %s179
        %s181 = sand.u32 %s29, 1
        %s182 = smul.addr %s181, 4
        %s183 = scalar_lea.vmem [#allocation2], %s182
        // Predicated region
        $region33: #{tpu_custom_call.1} parent=31 // pred_check
          %p184 = pneg %p42
        $region34: #{tpu_custom_call.1} parent=31 // pred_check_branch
          %186 = sbr.rel (%p184) target = $region36
        $region35: #{tpu_custom_call.1} parent=31 // pred_region
          %188 = dma.done %s180, 64
        $region36: #{tpu_custom_call.1} parent=31 // pred_fallthru
          _
        // Predicated region
        $region37: #{tpu_custom_call.1} parent=31 // pred_check
          %p189 = pneg %p63
        $region38: #{tpu_custom_call.1} parent=31 // pred_check_branch
          %191 = sbr.rel (%p189) target = $region40
        $region39: #{tpu_custom_call.1} parent=31 // pred_region
          %193 = dma.done [#allocation6], 64
        $region40: #{tpu_custom_call.1} parent=31 // pred_fallthru
          _
        // Predicated region
        $region41: #{tpu_custom_call.1} parent=31 // pred_check
          %p194 = pneg %p84
        $region42: #{tpu_custom_call.1} parent=31 // pred_check_branch
          %196 = sbr.rel (%p194) target = $region44
        $region43: #{tpu_custom_call.1} parent=31 // pred_region
          %198 = dma.done [#allocation6], 64
        $region44: #{tpu_custom_call.1} parent=31 // pred_fallthru
          _
        %s199 = sand.u32 %s29, 1
        %s200 = scalar_lea.sflag [#allocation3], %s199
        %s201 = sand.u32 %s29, 1
        %s202 = smul.addr %s201, 4
        %s203 = scalar_lea.vmem [#allocation2], %s202
        %p204 = pneg %p42
        %p205 = pneg %p39
        %p206 = pneg %p63
        %p207 = pneg %p60
        %p208 = pneg %p84
        %p209 = pneg %p81
        %p210 = pneg %p110
        %p211 = pneg %p107
        %s212 = sand.u32 %s97, 1
        %s213 = scalar_lea.sflag [#allocation4], %s212
        %s214 = sand.u32 %s97, 1
        %s215 = smul.addr %s214, 16
        %s216 = scalar_lea.vmem [#allocation8], %s215
        %v217 = vld [vmem:[%s183] sm:$0xf]
        %v218 = vld [vmem:[#allocation5] sm:$0xf]
        %v219 = vld [vmem:[#allocation7] sm:$0xf]
        %220 = vxpose.xlu0.b32.start [1/16] %v218, 128
        %221 = vxpose.xlu0.b32.cont [2/16] 0.0, 128
        %222 = vxpose.xlu0.b32.cont [3/16] 0.0, 128
        %223 = vxpose.xlu0.b32.cont [4/16] 0.0, 128
        %224 = vxpose.xlu0.b32.cont [5/16] 0.0, 128
        %225 = vxpose.xlu0.b32.cont [6/16] 0.0, 128
        %226 = vxpose.xlu0.b32.cont [7/16] 0.0, 128
        %227 = vxpose.xlu0.b32.cont [8/16] 0.0, 128
        %228 = vxpose.xlu0.b32.cont [9/16] 0.0, 128
        %229 = vxpose.xlu0.b32.cont [10/16] 0.0, 128
        %230 = vxpose.xlu0.b32.cont [11/16] 0.0, 128
        %231 = vxpose.xlu0.b32.cont [12/16] 0.0, 128
        %232 = vxpose.xlu0.b32.cont [13/16] 0.0, 128
        %233 = vxpose.xlu0.b32.cont [14/16] 0.0, 128
        %234 = vxpose.xlu0.b32.cont [15/16] 0.0, 128
        %235 = vxpose.xlu0.b32.end [16/16] 0.0, 128
        %v236 = vpop.trf.xlu0
        %v237 = vpop.trf.xlu0
        %v238 = vpop.trf.xlu0
        %v239 = vpop.trf.xlu0
        %v240 = vpop.trf.xlu0
        %v241 = vpop.trf.xlu0
        %v242 = vpop.trf.xlu0
        %v243 = vpop.trf.xlu0
        %v244 = vpop.trf.xlu0
        %v245 = vpop.trf.xlu0
        %v246 = vpop.trf.xlu0
        %v247 = vpop.trf.xlu0
        %v248 = vpop.trf.xlu0
        %v249 = vpop.trf.xlu0
        %v250 = vpop.trf.xlu0
        %v251 = vpop.trf.xlu0
        %vm252 = vcmask 31744
        %v254 = vsel %vm252, %v236, 0
        %vm256 = vcmask 1043456
        %v258 = vsel %vm256, %v217, 0
        %260 = vmatpush.msra.mxu0 0.0
        %261 = vmatpush.msra.mxu0 0.0
        %262 = vmatpush.msra.mxu0 0.0
        %263 = vmatpush.msra.mxu0 0.0
        %264 = vmatpush.msra.mxu0 0.0
        %265 = vmatpush.msra.mxu0 0.0
        %266 = vmatpush.msra.mxu0 0.0
        %267 = vmatpush.msra.mxu0 0.0
        %268 = vmatpush.msra.mxu0 0.0
        %269 = vmatpush.msra.mxu0 0.0
        %270 = vmatpush.msra.mxu0 0.0
        %271 = vmatpush.msra.mxu0 0.0
        %272 = vmatpush.msra.mxu0 0.0
        %273 = vmatpush.msra.mxu0 0.0
        %274 = vmatpush.msra.mxu0 0.0
        %275 = vmatpush.msra.mxu0 %v258
        %276 = vmatmul.f32.gmra.mxu0 %v254
        %v277 = vpop.f32.mrf.mxu0
        %v278 = vadd.f32 0.0, %v277
        %279 = vdwg.mxu0
        %280 = vxpose.xlu0.b32.start [1/16] %v219, 128
        %281 = vxpose.xlu0.b32.cont [2/16] 0.0, 128
        %282 = vxpose.xlu0.b32.cont [3/16] 0.0, 128
        %283 = vxpose.xlu0.b32.cont [4/16] 0.0, 128
        %284 = vxpose.xlu0.b32.cont [5/16] 0.0, 128
        %285 = vxpose.xlu0.b32.cont [6/16] 0.0, 128
        %286 = vxpose.xlu0.b32.cont [7/16] 0.0, 128
        %287 = vxpose.xlu0.b32.cont [8/16] 0.0, 128
        %288 = vxpose.xlu0.b32.cont [9/16] 0.0, 128
        %289 = vxpose.xlu0.b32.cont [10/16] 0.0, 128
        %290 = vxpose.xlu0.b32.cont [11/16] 0.0, 128
        %291 = vxpose.xlu0.b32.cont [12/16] 0.0, 128
        %292 = vxpose.xlu0.b32.cont [13/16] 0.0, 128
        %293 = vxpose.xlu0.b32.cont [14/16] 0.0, 128
        %294 = vxpose.xlu0.b32.cont [15/16] 0.0, 128
        %295 = vxpose.xlu0.b32.end [16/16] 0.0, 128
        %v296 = vpop.trf.xlu0
        %v297 = vpop.trf.xlu0
        %v298 = vpop.trf.xlu0
        %v299 = vpop.trf.xlu0
        %v300 = vpop.trf.xlu0
        %v301 = vpop.trf.xlu0
        %v302 = vpop.trf.xlu0
        %v303 = vpop.trf.xlu0
        %v304 = vpop.trf.xlu0
        %v305 = vpop.trf.xlu0
        %v306 = vpop.trf.xlu0
        %v307 = vpop.trf.xlu0
        %v308 = vpop.trf.xlu0
        %v309 = vpop.trf.xlu0
        %v310 = vpop.trf.xlu0
        %v311 = vpop.trf.xlu0
        %v313 = vsel %vm252, %v296, 0
        %315 = vmatpush.msra.mxu0 0.0
        %316 = vmatpush.msra.mxu0 0.0
        %317 = vmatpush.msra.mxu0 0.0
        %318 = vmatpush.msra.mxu0 0.0
        %319 = vmatpush.msra.mxu0 0.0
        %320 = vmatpush.msra.mxu0 0.0
        %321 = vmatpush.msra.mxu0 0.0
        %322 = vmatpush.msra.mxu0 0.0
        %323 = vmatpush.msra.mxu0 0.0
        %324 = vmatpush.msra.mxu0 0.0
        %325 = vmatpush.msra.mxu0 0.0
        %326 = vmatpush.msra.mxu0 0.0
        %327 = vmatpush.msra.mxu0 0.0
        %328 = vmatpush.msra.mxu0 0.0
        %329 = vmatpush.msra.mxu0 0.0
        %330 = vmatpush.msra.mxu0 %v258
        %331 = vmatmul.f32.gmra.mxu0 %v313
        %v332 = vpop.f32.mrf.mxu0
        %v333 = vadd.f32 0.0, %v332
        %334 = vdwg.mxu0
        %vm335 = vcmp.gt.f32.partialorder %v278, 0.0
        %v336 = vmul.f32 %v278, 0.01
        %v337 = vsel %vm335, %v278, %v336
        %vm338 = vcmp.gt.f32.partialorder %v333, 0.0
        %v339 = vmul.f32 %v333, 0.01
        %v340 = vsel %vm338, %v333, %v339
        %341 = vxpose.xlu0.b32.start [1/16] %v337, 128
        %342 = vxpose.xlu0.b32.cont [2/16] 0.0, 128
        %343 = vxpose.xlu0.b32.cont [3/16] 0.0, 128
        %344 = vxpose.xlu0.b32.cont [4/16] 0.0, 128
        %345 = vxpose.xlu0.b32.cont [5/16] 0.0, 128
        %346 = vxpose.xlu0.b32.cont [6/16] 0.0, 128
        %347 = vxpose.xlu0.b32.cont [7/16] 0.0, 128
        %348 = vxpose.xlu0.b32.cont [8/16] 0.0, 128
        %349 = vxpose.xlu0.b32.cont [9/16] 0.0, 128
        %350 = vxpose.xlu0.b32.cont [10/16] 0.0, 128
        %351 = vxpose.xlu0.b32.cont [11/16] 0.0, 128
        %352 = vxpose.xlu0.b32.cont [12/16] 0.0, 128
        %353 = vxpose.xlu0.b32.cont [13/16] 0.0, 128
        %354 = vxpose.xlu0.b32.cont [14/16] 0.0, 128
        %355 = vxpose.xlu0.b32.cont [15/16] 0.0, 128
        %356 = vxpose.xlu0.b32.end [16/16] 0.0, 128
        %v357 = vpop.trf.xlu0
        %v358 = vpop.trf.xlu0
        %v359 = vpop.trf.xlu0
        %v360 = vpop.trf.xlu0
        %v361 = vpop.trf.xlu0
        %v362 = vpop.trf.xlu0
        %v363 = vpop.trf.xlu0
        %v364 = vpop.trf.xlu0
        %v365 = vpop.trf.xlu0
        %v366 = vpop.trf.xlu0
        %v367 = vpop.trf.xlu0
        %v368 = vpop.trf.xlu0
        %v369 = vpop.trf.xlu0
        %v370 = vpop.trf.xlu0
        %v371 = vpop.trf.xlu0
        %v372 = vpop.trf.xlu0
        %vm373 = vcmask 64512
        %v375 = vsel %vm373, %v357, 0
        %v378 = vsel %vm373, %v358, 0
        %380 = vmatpush.msra.mxu0 0.0
        %381 = vmatpush.msra.mxu0 0.0
        %382 = vmatpush.msra.mxu0 0.0
        %383 = vmatpush.msra.mxu0 0.0
        %384 = vmatpush.msra.mxu0 0.0
        %385 = vmatpush.msra.mxu0 0.0
        %386 = vmatpush.msra.mxu0 0.0
        %387 = vmatpush.msra.mxu0 0.0
        %388 = vmatpush.msra.mxu0 0.0
        %389 = vmatpush.msra.mxu0 0.0
        %390 = vmatpush.msra.mxu0 0.0
        %391 = vmatpush.msra.mxu0 0.0
        %392 = vmatpush.msra.mxu0 0.0
        %393 = vmatpush.msra.mxu0 0.0
        %394 = vmatpush.msra.mxu0 0.0
        %395 = vmatpush.msra.mxu0 %v340
        %396 = vmatmul.f32.gmra.mxu0 %v375
        %v397 = vpop.f32.mrf.mxu0
        %v398 = vadd.f32 0.0, %v397
        %399 = vmatmul.f32.gmra.mxu0 %v378
        %v400 = vpop.f32.mrf.mxu0
        %v401 = vadd.f32 0.0, %v400
        %402 = vdwg.mxu0
        %vm403 = vcmask 130048
        %v404 = vsel %vm403, %v398, -inf
        %v405 = vsel %vm403, %v401, -inf
        %v406 = vmax.f32 %v404, %v405
        %v407 = vrot.slane %v406, 4
        %v408 = vmax.f32 %v406, %v407
        %v409 = vrot.slane %v408, 2
        %v410 = vmax.f32 %v408, %v409
        %v411 = vrot.slane %v410, 1
        %v412 = vmax.f32 %v410, %v411
        %v413 = vsub.f32 %v398, %v412
        %v414 = vsub.f32 %v401, %v412
        %v415 = vmul.f32 %v413, 1.442695
        %v416 = vpow.pop %v415
        %v417 = vmul.f32 %v414, 1.442695
        %v418 = vpow.pop %v417
        %v419 = vsel %vm403, %v416, 0.0
        %v420 = vsel %vm403, %v418, 0.0
        %v421 = vadd.f32 %v419, %v420
        %v422 = vrot.slane %v421, 4
        %v423 = vadd.f32 %v421, %v422
        %v424 = vrot.slane %v423, 2
        %v425 = vadd.f32 %v423, %v424
        %v426 = vrot.slane %v425, 1
        %v427 = vadd.f32 %v425, %v426
        %v428 = vrcp.pop %v427
        %v429 = vmul.f32 %v427, %v428
        %v430 = vsub.f32 1.0, %v429
        %v431 = vmul.f32 %v428, %v430
        %v432 = vadd.f32 %v428, %v431
        %vm433 = vweird.f32 %v427
        %vm434 = vweird.f32 %v428
        %vm435 = vmor %vm433, %vm434
        %v436 = vsel %vm435, %v428, %v432
        %v437 = vand.u32 2147483647, %v427
        %vm438 = vcmp.eq.f32.partialorder %v437, 8.507059e+37
        %v439 = vand.u32 %v427, 2147483648
        %v440 = vor.u32 1.1754944e-38, %v439
        %v441 = vsel %vm438, %v440, %v436
        %v442 = vmul.f32 %v416, %v441
        %v443 = vmul.f32 %v418, %v441
        %444 = vst.msk [vmem:[%s216] sm:$0xff] %vm403, %v442
        %445 = vst.msk [vmem:[%s216 + $0x8] sm:$0xff] %vm403, %v443
        %s446 = sand.u32 %s97, 1
        %s447 = scalar_lea.sflag [#allocation4], %s446
        %s448 = sand.u32 %s97, 1
        %s449 = smul.addr %s448, 16
        %s450 = scalar_lea.vmem [#allocation8], %s449
        // Predicated region
        $region45: #{tpu_custom_call.1} parent=31 // pred_check
          %p451 = pneg %p107
        $region46: #{tpu_custom_call.1} parent=31 // pred_check_branch
          %453 = sbr.rel (%p451) target = $region48
        $region47: #{tpu_custom_call.1} parent=31 // pred_region
          %455 = vsyncadd %s447, 0
          %s456 = smul.addr %s21, 2
          %s457 = smul.addr %s456, 8
          %s458 = scalar_lea.hbm %s3, %s457
          %s459 = sshll.u32 %s450, 4
          %s460 = int_to_ptr.vmem [resolvable:$true] %s459
          %s461 = sshll.u32 %s458, 4
          %s462 = int_to_ptr.hbm [resolvable:$true] %s461
          %467 = dma.vmem_to_hbm [thread:$0]  %s460, 256, %s462, %s447, 128, 128, 8
        $region48: #{tpu_custom_call.1} parent=31 // pred_fallthru
          _
      $region32: #{tpu_custom_call.1} parent=5 // pred_fallthru
        _
      %p468 = scmp.le.s32.totalorder 2, %s16
      // Predicated region
      $region49: #{tpu_custom_call.1} parent=5 // pred_check
        %p469 = pneg %p468
      $region50: #{tpu_custom_call.1} parent=5 // pred_check_branch
        %471 = sbr.rel (%p469) target = $region52
      $region51: #{tpu_custom_call.1} parent=5 // pred_region
        %s472 = ssub.s32 %s16, 2
        // Predicated region
        $region53: #{tpu_custom_call.1} parent=51 // pred_check
          %p473 = pneg %p113
        $region54: #{tpu_custom_call.1} parent=51 // pred_check_branch
          %475 = sbr.rel (%p473) target = $region56
        $region55: #{tpu_custom_call.1} parent=51 // pred_region
          %s476 = sand.u32 %s98, 1
          %s477 = scalar_lea.sflag [#allocation4], %s476
          %s478 = sand.u32 %s98, 1
          %s479 = smul.addr %s478, 16
          %s480 = scalar_lea.vmem [#allocation8], %s479
          %482 = dma.done %s477, 256
        $region56: #{tpu_custom_call.1} parent=51 // pred_fallthru
          _
      $region52: #{tpu_custom_call.1} parent=5 // pred_fallthru
        _
    $region6: #{tpu_custom_call.1} parent=1 // loop_footer
      %s20 = sadd.s32 1, %s16
    $region7: #{tpu_custom_call.1} parent=1 // loop_footer_branch
      %15 = sbr.rel target = $region3
    $region8: #{tpu_custom_call.1} parent=1 // loop_exit
      _
    %483 = vsyncpa [#allocation3], 1
    %s484 = scalar_lea.sflag [#allocation3], 1
    %485 = vsyncpa %s484, 1
    %486 = vsyncpa [#allocation6], 1
    %487 = vsyncpa [#allocation4], 1
    %s488 = scalar_lea.sflag [#allocation4], 1
    %489 = vsyncpa %s488, 1

</llo_original>
